<compile_context>
chip_gen: v7x
topology: tpu7x:2x2x1
jax: 0.10.0
libtpu: 0.0.40
codegen_flags: <defaults>
</compile_context>

<pallas_src>
import functools

import jax
import jax.numpy as jnp
from jax import lax
from jax.experimental import pallas as pl
from jax.experimental.pallas import tpu as pltpu


def _pad_to(n, m):
    return ((n + m - 1) // m) * m


_ROW_ALIGN = 16   # one packed bf16 sublane tile (also 8-aligned for f32 packing)
_LANE = 128


# ----------------------------------------------------------------------------
# Parameter packing: one resident buffer, weights stored (out, in).
# ----------------------------------------------------------------------------
def _layer_dims(num_layer, dimS, nA, hidden1, hidden2, hidden3):
    if num_layer == 2:
        return [(dimS, hidden1), (hidden1, hidden2), (hidden2, nA)]
    return [(dimS, hidden1), (hidden1, hidden2), (hidden2, hidden3), (hidden3, nA)]


def _param_layout(num_layer, dimS, nA, hidden1, hidden2, hidden3):
    """Row offsets of each (W, b) segment inside the packed buffer.

    Weights are stored transposed vs. make_params (i.e. (out, in)); biases are
    stored as (out, 1) columns so they broadcast over the lane (batch) axis.
    The final layer's out dim is zero-padded to a multiple of 8 sublanes.
    Feature dims are < 128, so per-layer lane sub-slices of the resident buffer
    are unavoidable; they are tiny VMEM reads and deliberate.
    """
    dims = _layer_dims(num_layer, dimS, nA, hidden1, hidden2, hidden3)
    na_sub = _pad_to(nA, 8)
    offs = {}
    row = 0
    for li, (_, d_out) in enumerate(dims):
        rows = na_sub if li == len(dims) - 1 else d_out
        offs[f"w{li + 1}"] = row
        row += _pad_to(rows, _ROW_ALIGN)
        offs[f"b{li + 1}"] = row
        row += _pad_to(rows, _ROW_ALIGN)
    width = _pad_to(max(d_in for d_in, _ in dims), _LANE)
    return offs, row, width, na_sub, dims


def pack_params(params, num_layer, dimS, nA, hidden1, hidden2, hidden3,
                dtype=jnp.bfloat16):
    """Pack all (W, b) pairs into ONE buffer (bf16 by default for the MXU)."""
    offs, rows, width, na_sub, dims = _param_layout(
        num_layer, dimS, nA, hidden1, hidden2, hidden3)
    del na_sub
    buf = jnp.zeros((rows, width), dtype)
    it = iter(params)
    for li, (d_in, d_out) in enumerate(dims):
        w = jnp.asarray(next(it), jnp.float32)
        b = jnp.asarray(next(it), jnp.float32).reshape(-1)
        assert w.shape == (d_in, d_out) and b.shape == (d_out,)
        r_w = offs[f"w{li + 1}"]
        r_b = offs[f"b{li + 1}"]
        buf = buf.at[r_w:r_w + d_out, 0:d_in].set(w.T.astype(dtype))
        buf = buf.at[r_b:r_b + d_out, 0:1].set(b[:, None].astype(dtype))
    return buf


# ----------------------------------------------------------------------------
# Kernel
# ----------------------------------------------------------------------------
def _elu(x):
    # F.elu (alpha=1); clamp the exp argument so the inactive branch is hygienic.
    return jnp.where(x > 0, x, jnp.exp(jnp.minimum(x, 0.0)) - 1.0)


def _softmax_over_rows(x, n_valid):
    """Softmax over axis 0 (action rows), ignoring zero-padded rows >= n_valid."""
    row = lax.broadcasted_iota(jnp.int32, x.shape, 0)
    x = jnp.where(row < n_valid, x, -jnp.inf)
    m = jnp.max(x, axis=0, keepdims=True)
    e = jnp.exp(x - m)
    denom = jnp.sum(e, axis=0, keepdims=True)
    # EUP reciprocal (~2^-12 rel. error) -- covered by the self-test tolerance.
    return e * pl.reciprocal(denom, approx=True)


def _ppo_actor_kernel(state_ref, p_ref, out_ref, *, num_layer, offs, dims,
                      nA, na_sub):
    cdt = p_ref.dtype                       # MXU operand dtype (bf16 by default)
    x = state_ref[...].astype(cdt)          # (TB, dimS): batch still on sublanes

    def w(i, d_in, rows):
        r = offs[f"w{i}"]
        return p_ref[r:r + rows, 0:d_in]                      # (out, in), cdt

    def b(i, rows):
        r = offs[f"b{i}"]
        return p_ref[r:r + rows, 0:1].astype(jnp.float32)     # (out, 1)

    d_in1, d_out1 = dims[0]
    # First layer contracts the feature axis of BOTH operands, so the batch
    # lands on the lane axis with no explicit transpose:
    #   (h1, dimS) x (TB, dimS) -> (h1, TB)
    h = lax.dot_general(w(1, d_in1, d_out1), x, (((1,), (1,)), ((), ())),
                        preferred_element_type=jnp.float32)
    h = _elu(h + b(1, d_out1))

    n_layers = len(dims)
    for li in range(1, n_layers):           # static unroll (2 or 3 layers)
        d_in, d_out = dims[li]
        rows = na_sub if li == n_layers - 1 else d_out
        z = jnp.dot(w(li + 1, d_in, rows), h.astype(cdt),
                    preferred_element_type=jnp.float32) + b(li + 1, rows)
        if li == n_layers - 1:
            if num_layer == 2:
                # Reference applies torch.exp on top of softmax (num_layer==2 quirk).
                p = _softmax_over_rows(z, nA)
                out_ref[...] = jnp.exp(p).astype(out_ref.dtype)
            else:
                out_ref[...] = _softmax_over_rows(_elu(z), nA).astype(out_ref.dtype)
        else:
            h = _elu(z)


# ----------------------------------------------------------------------------
# Wrapper
# ----------------------------------------------------------------------------
def ppo_actor_forward(state, packed_params, *, num_layer, dimS, nA,
                      hidden1, hidden2, hidden3, block_b=2048,
                      out_dtype=jnp.float32, core_parallel=False):
    """Batched PPOActor forward.  `packed_params` comes from pack_params().

    Set core_parallel=True on v7x to shard the batch grid axis across both
    TensorCores (leave False on single-TC v5e/v6e).
    Set out_dtype=jnp.bfloat16 to halve output writeback (e.g. on v5e).
    """
    B = state.shape[0]
    assert state.shape[1] == dimS
    offs, p_rows, p_width, na_sub, dims = _param_layout(
        num_layer, dimS, nA, hidden1, hidden2, hidden3)
    assert packed_params.shape == (p_rows, p_width), (packed_params.shape,
                                                      (p_rows, p_width))

    # Batch tiling: the batch is the LANE axis of activations and output, so the
    # tile must be a multiple of 128.  Big tiles amortize per-grid-step overhead;
    # keep >=2 steps when the batch allows it so CORE_PARALLEL can use both v7x
    # TensorCores (one extra step is negligible on single-TC chips).
    b128 = _pad_to(B, _LANE)
    tb = min(_pad_to(block_b, _LANE), b128)
    tb = min(tb, max(_LANE, _pad_to((b128 + 1) // 2, _LANE)))
    b_pad = _pad_to(B, tb)
    if b_pad != B:
        state = jnp.pad(state, ((0, b_pad - B), (0, 0)))

    kernel = functools.partial(
        _ppo_actor_kernel, num_layer=num_layer, offs=offs, dims=dims,
        nA=nA, na_sub=na_sub)

    # Advisory cost estimate (tiny kernel; helps XLA schedule around it).
    flops = 2 * B * sum(i * o for i, o in dims)
    elu_elems = B * sum(o for _, o in dims[:-1]) + (0 if num_layer == 2 else B * nA)
    softmax_exps = B * nA * (2 if num_layer == 2 else 1)
    bytes_accessed = int(
        b_pad * dimS * jnp.dtype(state.dtype).itemsize
        + p_rows * p_width * jnp.dtype(packed_params.dtype).itemsize
        + na_sub * b_pad * jnp.dtype(out_dtype).itemsize)

    grid_sem = (pltpu.CORE_PARALLEL,) if core_parallel else ("parallel",)

    out_padded = pl.pallas_call(
        kernel,
        out_shape=jax.ShapeDtypeStruct((na_sub, b_pad), out_dtype),
        grid=(b_pad // tb,),
        in_specs=[
            # state: batch-tiled in its natural (B, dimS) orientation.
            pl.BlockSpec((tb, dimS), lambda i: (i, 0)),
            # packed params: whole array placed in VMEM once (single-buffered,
            # resident for all grid steps -- no per-step param DMA).
            pl.BlockSpec(memory_space=pltpu.MemorySpace.VMEM),
        ],
        # Output is (actions x batch): lane-dense unmasked stores, only
        # pad8(nA) rows of writeback instead of a 128-lane padded row/sample.
        out_specs=pl.BlockSpec((na_sub, tb), lambda i: (0, i)),
        compiler_params=pltpu.CompilerParams(dimension_semantics=grid_sem),
        cost_estimate=pl.CostEstimate(flops=int(flops),
                                      transcendentals=int(elu_elems + softmax_exps),
                                      bytes_accessed=bytes_accessed),
    )(state, packed_params)

    return out_padded[:nA, :B].T.astype(jnp.float32)


# ----------------------------------------------------------------------------
# Deterministic init + pure-JAX reference (mirrors the PyTorch module)
# ----------------------------------------------------------------------------
def _init_linear(key, fan_in, fan_out):
    kw, kb = jax.random.split(key)
    bound = 1.0 / jnp.sqrt(jnp.float32(fan_in))
    w = jax.random.uniform(kw, (fan_in, fan_out), jnp.float32, -bound, bound)
    b = jax.random.uniform(kb, (1, fan_out), jnp.float32, -bound, bound)
    return w, b


def make_params(key, num_layer, dimS, nA, hidden1, hidden2, hidden3):
    keys = jax.random.split(key, 4)
    w1, b1 = _init_linear(keys[0], dimS, hidden1)
    w2, b2 = _init_linear(keys[1], hidden1, hidden2)
    if num_layer == 2:
        w3, b3 = _init_linear(keys[2], hidden2, nA)
        return (w1, b1, w2, b2, w3, b3)
    w3, b3 = _init_linear(keys[2], hidden2, hidden3)
    w4, b4 = _init_linear(keys[3], hidden3, nA)
    return (w1, b1, w2, b2, w3, b3, w4, b4)


def reference_forward(state, params, num_layer):
    elu = jax.nn.elu
    if num_layer == 2:
        w1, b1, w2, b2, w3, b3 = params
        x = elu(state @ w1 + b1)
        x = elu(x @ w2 + b2)
        p = jax.nn.softmax(x @ w3 + b3, axis=-1)
        return jnp.exp(p)
    w1, b1, w2, b2, w3, b3, w4, b4 = params
    x = elu(state @ w1 + b1)
    x = elu(x @ w2 + b2)
    x = elu(x @ w3 + b3)
    x = elu(x @ w4 + b4)
    return jax.nn.softmax(x, axis=-1)


if __name__ == "__main__":
    key = jax.random.PRNGKey(0)
    k_s2, k_s3, k_p2, k_p3 = jax.random.split(key, 4)

    dimS, nA = 16, 6              # nA=6 exercises padded action rows (na_sub=8)
    hidden1 = hidden2 = hidden3 = 32

    # bf16 MXU operands + EUP approx-reciprocal vs. an all-f32 reference:
    # probabilities are O(1), so 1e-2 abs/rel comfortably covers the rounding.
    TOL = 1e-2

    # --- num_layer == 2 (exp(softmax) quirk), small batch, single tile -------
    B2 = 8
    state2 = jax.random.normal(k_s2, (B2, dimS), jnp.float32)
    params2 = make_params(k_p2, 2, dimS, nA, hidden1, hidden2, hidden3)
    packed2 = pack_params(params2, 2, dimS, nA, hidden1, hidden2, hidden3)
    out2 = jax.block_until_ready(ppo_actor_forward(
        state2, packed2, num_layer=2, dimS=dimS, nA=nA,
        hidden1=hidden1, hidden2=hidden2, hidden3=hidden3))
    ref2 = reference_forward(state2, params2, 2)
    assert out2.shape == (B2, nA)
    assert jnp.allclose(out2, ref2, atol=TOL, rtol=TOL), \
        float(jnp.max(jnp.abs(out2 - ref2)))

    # --- num_layer == 3 (4 Linears, softmax of ELU), padded multi-step grid ---
    B3 = 300                      # non-multiple of the tile: padding + 2 grid steps
    state3 = jax.random.normal(k_s3, (B3, dimS), jnp.float32)
    params3 = make_params(k_p3, 3, dimS, nA, hidden1, hidden2, hidden3)
    packed3 = pack_params(params3, 3, dimS, nA, hidden1, hidden2, hidden3)
    out3 = jax.block_until_ready(ppo_actor_forward(
        state3, packed3, num_layer=3, dimS=dimS, nA=nA,
        hidden1=hidden1, hidden2=hidden2, hidden3=hidden3, block_b=256))
    ref3 = reference_forward(state3, params3, 3)
    assert out3.shape == (B3, nA)
    assert jnp.allclose(out3, ref3, atol=TOL, rtol=TOL), \
        float(jnp.max(jnp.abs(out3 - ref3)))

    print("KERNEL_OK")
</pallas_src>

<mosaic_0001>
module attributes {stable_mosaic.version = 11 : i64} {
  func.func @_ppo_actor_kernel(%arg0: i32, %arg1: memref<128x16xf32, #tpu.memory_space<vmem>>, %arg2: memref<160x128xbf16, #tpu.memory_space<vmem>>, %arg3: memref<8x128xf32, #tpu.memory_space<vmem>>) attributes {dimension_semantics = [#tpu.dimension_semantics<parallel>], iteration_bounds = array<i64: 1>, scalar_prefetch = 0 : i64, scratch_operands = 0 : i64, tpu.core_type = #tpu.core_type<tc>, window_params = [{transform_indices = @transform_0, window_bounds = array<i64: 128, 16>}, {pipeline_mode = #tpu.pipeline_mode<synchronous>, transform_indices = @transform_1, window_bounds = array<i64: 160, 128>}, {transform_indices = @transform_2, window_bounds = array<i64: 8, 128>}]} {
    %c0 = arith.constant 0 : index
    %c0_0 = arith.constant 0 : index
    %0 = vector.load %arg1[%c0, %c0_0] : memref<128x16xf32, #tpu.memory_space<vmem>>, vector<128x16xf32>
    %1 = arith.truncf %0 : vector<128x16xf32> to vector<128x16xbf16>
    %c0_1 = arith.constant 0 : index
    %c0_2 = arith.constant 0 : index
    %2 = vector.load %arg2[%c0_1, %c0_2] : memref<160x128xbf16, #tpu.memory_space<vmem>>, vector<32x16xbf16>
    %cst = arith.constant dense<0.000000e+00> : vector<32x128xf32>
    %3 = tpu.matmul %2, %1, %cst {dimension_numbers = #tpu.dot_dimension_numbers<[1], [1], [0], [0], [0, 0, 1, 0], [], []>} : vector<32x16xbf16>, vector<128x16xbf16>, vector<32x128xf32> -> vector<32x128xf32>
    %c32 = arith.constant 32 : index
    %c0_3 = arith.constant 0 : index
    %4 = vector.load %arg2[%c32, %c0_3] : memref<160x128xbf16, #tpu.memory_space<vmem>>, vector<32x1xbf16>
    %5 = arith.extf %4 : vector<32x1xbf16> to vector<32x1xf32>
    %6 = vector.broadcast %5 : vector<32x1xf32> to vector<32x128xf32>
    %7 = arith.addf %3, %6 : vector<32x128xf32>
    %cst_4 = arith.constant 0.000000e+00 : f32
    %8 = vector.broadcast %cst_4 : f32 to vector<32x128xf32>
    %9 = arith.cmpf ogt, %7, %8 : vector<32x128xf32>
    %cst_5 = arith.constant 0.000000e+00 : f32
    %10 = vector.broadcast %cst_5 : f32 to vector<32x128xf32>
    %11 = arith.minimumf %7, %10 : vector<32x128xf32>
    %12 = math.exp %11 : vector<32x128xf32>
    %cst_6 = arith.constant 1.000000e+00 : f32
    %13 = vector.broadcast %cst_6 : f32 to vector<32x128xf32>
    %14 = arith.subf %12, %13 : vector<32x128xf32>
    %15 = arith.select %9, %7, %14 : vector<32x128xi1>, vector<32x128xf32>
    %c64 = arith.constant 64 : index
    %c0_7 = arith.constant 0 : index
    %16 = vector.load %arg2[%c64, %c0_7] : memref<160x128xbf16, #tpu.memory_space<vmem>>, vector<32x32xbf16>
    %17 = arith.truncf %15 : vector<32x128xf32> to vector<32x128xbf16>
    %cst_8 = arith.constant dense<0.000000e+00> : vector<32x128xf32>
    %18 = tpu.matmul %16, %17, %cst_8 {dimension_numbers = #tpu.dot_dimension_numbers<[1], [0], [0], [1], [0, 0, 1, 1], [], []>} : vector<32x32xbf16>, vector<32x128xbf16>, vector<32x128xf32> -> vector<32x128xf32>
    %c96 = arith.constant 96 : index
    %c0_9 = arith.constant 0 : index
    %19 = vector.load %arg2[%c96, %c0_9] : memref<160x128xbf16, #tpu.memory_space<vmem>>, vector<32x1xbf16>
    %20 = arith.extf %19 : vector<32x1xbf16> to vector<32x1xf32>
    %21 = vector.broadcast %20 : vector<32x1xf32> to vector<32x128xf32>
    %22 = arith.addf %18, %21 : vector<32x128xf32>
    %cst_10 = arith.constant 0.000000e+00 : f32
    %23 = vector.broadcast %cst_10 : f32 to vector<32x128xf32>
    %24 = arith.cmpf ogt, %22, %23 : vector<32x128xf32>
    %cst_11 = arith.constant 0.000000e+00 : f32
    %25 = vector.broadcast %cst_11 : f32 to vector<32x128xf32>
    %26 = arith.minimumf %22, %25 : vector<32x128xf32>
    %27 = math.exp %26 : vector<32x128xf32>
    %cst_12 = arith.constant 1.000000e+00 : f32
    %28 = vector.broadcast %cst_12 : f32 to vector<32x128xf32>
    %29 = arith.subf %27, %28 : vector<32x128xf32>
    %30 = arith.select %24, %22, %29 : vector<32x128xi1>, vector<32x128xf32>
    %c128 = arith.constant 128 : index
    %c0_13 = arith.constant 0 : index
    %31 = vector.load %arg2[%c128, %c0_13] : memref<160x128xbf16, #tpu.memory_space<vmem>>, vector<8x32xbf16>
    %32 = arith.truncf %30 : vector<32x128xf32> to vector<32x128xbf16>
    %cst_14 = arith.constant dense<0.000000e+00> : vector<8x128xf32>
    %33 = tpu.matmul %31, %32, %cst_14 {dimension_numbers = #tpu.dot_dimension_numbers<[1], [0], [0], [1], [0, 0, 1, 1], [], []>} : vector<8x32xbf16>, vector<32x128xbf16>, vector<8x128xf32> -> vector<8x128xf32>
    %c144 = arith.constant 144 : index
    %c0_15 = arith.constant 0 : index
    %34 = vector.load %arg2[%c144, %c0_15] : memref<160x128xbf16, #tpu.memory_space<vmem>>, vector<8x1xbf16>
    %35 = arith.extf %34 : vector<8x1xbf16> to vector<8x1xf32>
    %36 = vector.broadcast %35 : vector<8x1xf32> to vector<8x128xf32>
    %37 = arith.addf %33, %36 : vector<8x128xf32>
    %38 = tpu.iota {dimensions = array<i32: 0>} : vector<8x128xi32>
    %c6_i32 = arith.constant 6 : i32
    %39 = vector.broadcast %c6_i32 : i32 to vector<8x128xi32>
    %40 = arith.cmpi slt, %38, %39 : vector<8x128xi32>
    %cst_16 = arith.constant 0xFF800000 : f32
    %41 = vector.broadcast %cst_16 : f32 to vector<8x128xf32>
    %42 = arith.select %40, %37, %41 : vector<8x128xi1>, vector<8x128xf32>
    %cst_17 = arith.constant dense<0xFF800000> : vector<128xf32>
    %43 = vector.multi_reduction <maximumf>, %42, %cst_17 [0] : vector<8x128xf32> to vector<128xf32>
    %44 = vector.shape_cast %43 : vector<128xf32> to vector<1x128xf32>
    %45 = vector.broadcast %44 : vector<1x128xf32> to vector<8x128xf32>
    %46 = arith.subf %42, %45 : vector<8x128xf32>
    %47 = math.exp %46 : vector<8x128xf32>
    %cst_18 = arith.constant dense<0.000000e+00> : vector<128xf32>
    %48 = vector.multi_reduction <add>, %47, %cst_18 [0] : vector<8x128xf32> to vector<128xf32>
    %49 = vector.shape_cast %48 : vector<128xf32> to vector<1x128xf32>
    %50 = tpu.reciprocal %49 {approx = true} : vector<1x128xf32> -> vector<1x128xf32>
    %51 = vector.broadcast %50 : vector<1x128xf32> to vector<8x128xf32>
    %52 = arith.mulf %47, %51 : vector<8x128xf32>
    %53 = math.exp %52 : vector<8x128xf32>
    %c0_19 = arith.constant 0 : index
    %c0_20 = arith.constant 0 : index
    %54 = vector.load %arg3[%c0_19, %c0_20] : memref<8x128xf32, #tpu.memory_space<vmem>>, vector<8x128xf32>
    tpu.vector_store %arg3[%c0_19, %c0_20], %53 {strides = array<i32>} : memref<8x128xf32, #tpu.memory_space<vmem>>, vector<8x128xf32>,
    return
  }
  func.func @transform_0(%arg0: i32) -> (i32, i32) {
    %c0_i32 = arith.constant 0 : i32
    %c0_i32_0 = arith.constant 0 : i32
    return %arg0, %c0_i32 : i32, i32
  }
  func.func @transform_1(%arg0: i32) -> (i32, i32) {
    %c0_i32 = arith.constant 0 : i32
    %c0_i32_0 = arith.constant 0 : i32
    %c0_i32_1 = arith.constant 0 : i32
    return %c0_i32, %c0_i32_0 : i32, i32
  }
  func.func @transform_2(%arg0: i32) -> (i32, i32) {
    %c0_i32 = arith.constant 0 : i32
    %c0_i32_0 = arith.constant 0 : i32
    return %c0_i32, %arg0 : i32, i32
  }
}

</mosaic_0001>

<llo_original>
// kernel: tpu_custom_call.1
$region0: #{tpu_custom_call.1}
  #allocation0 [shape = 'u32[]', space=smem, size = 0x4, offset = 0x4, fixed_abs, tag = 'smem constant byte address 0x4 - core index']
  #allocation1 [shape = 'u32[144,128]{1,0:T(1,128)}', space=vmem, size = 0x12000, scoped, tag = 'internal scratch']
  %s0 = inlined_call_operand.vmem [shape: f32[128,16], index: 0, kind: input, shape index: {}]
  %s1 = inlined_call_operand.vmem [shape: bf16[160,128], index: 1, kind: input, shape index: {}]
  %s2 = inlined_call_operand.hbm [shape: f32[8,128], index: 2, kind: output, shape index: {}]
  %s3 = sld [smem:[#allocation0]]
  $region18: #{tpu_custom_call.1} parent=0
    _
  %s5 = ssub.s32 1, %s3
  %s6 = scalar_select 0, %s5, %s3
  $region1: #{tpu_custom_call.1} parent=0
    #allocation2 [shape = 'u8[4096]{0}', space=vmem, size = 0x1000, scoped, tag = 'output window, operand 0, single buffered']
    #allocation3 [shape = 's32[1]{0}', space=sflag, size = 0x4, scoped, tag = 'scoped memory for tpu_custom_call.1']
    %7 = vsyncpa [#allocation3], 0
    // Predicated region
    $region2: #{tpu_custom_call.1} parent=1 // pred_check
      _
    $region3: #{tpu_custom_call.1} parent=1 // pred_check_branch
      %9 = sbr.rel (0) target = $region5
    $region4: #{tpu_custom_call.1} parent=1 // pred_region
      _
    $region5: #{tpu_custom_call.1} parent=1 // pred_fallthru
      _
    // Predicated region
    $region6: #{tpu_custom_call.1} parent=1 // pred_check
      _
    $region7: #{tpu_custom_call.1} parent=1 // pred_check_branch
      %11 = sbr.rel (0) target = $region9
    $region8: #{tpu_custom_call.1} parent=1 // pred_region
      _
    $region9: #{tpu_custom_call.1} parent=1 // pred_fallthru
      _
    %v13 = vld [vmem:[%s0] sm:$0xff]
    %v14 = vld [vmem:[%s0 + $0x8] sm:$0xff]
    %v15 = vld [vmem:[%s0 + $0x10] sm:$0xff]
    %v16 = vld [vmem:[%s0 + $0x18] sm:$0xff]
    %v17 = vld [vmem:[%s0 + $0x20] sm:$0xff]
    %v18 = vld [vmem:[%s0 + $0x28] sm:$0xff]
    %v19 = vld [vmem:[%s0 + $0x30] sm:$0xff]
    %v20 = vld [vmem:[%s0 + $0x38] sm:$0xff]
    %v21 = vld [vmem:[%s0 + $0x40] sm:$0xff]
    %v22 = vld [vmem:[%s0 + $0x48] sm:$0xff]
    %v23 = vld [vmem:[%s0 + $0x50] sm:$0xff]
    %v24 = vld [vmem:[%s0 + $0x58] sm:$0xff]
    %v25 = vld [vmem:[%s0 + $0x60] sm:$0xff]
    %v26 = vld [vmem:[%s0 + $0x68] sm:$0xff]
    %v27 = vld [vmem:[%s0 + $0x70] sm:$0xff]
    %v28 = vld [vmem:[%s0 + $0x78] sm:$0xff]
    %v29 = vpack.c.bf16 %v14, %v13
    %v30 = vpack.c.bf16 %v16, %v15
    %v31 = vpack.c.bf16 %v18, %v17
    %v32 = vpack.c.bf16 %v20, %v19
    %v33 = vpack.c.bf16 %v22, %v21
    %v34 = vpack.c.bf16 %v24, %v23
    %v35 = vpack.c.bf16 %v26, %v25
    %v36 = vpack.c.bf16 %v28, %v27
    %v37 = vld [vmem:[%s1] sm:$0xf]
    %v38 = vld [vmem:[%s1 + $0x4] sm:$0xf]
    %v39 = vld [vmem:[%s1 + $0x8] sm:$0xf]
    %v40 = vld [vmem:[%s1 + $0xc] sm:$0xf]
    %v41 = vld [vmem:[%s1 + $0x10] sm:$0xf]
    %v42 = vld [vmem:[%s1 + $0x14] sm:$0xf]
    %v43 = vld [vmem:[%s1 + $0x18] sm:$0xf]
    %v44 = vld [vmem:[%s1 + $0x1c] sm:$0xf]
    %v45 = vunpack.c.l.bf16 %v41
    %v46 = vunpack.c.l.bf16 %v42
    %v47 = vunpack.c.l.bf16 %v43
    %v48 = vunpack.c.l.bf16 %v44
    %50 = vset.pattern.permute.xlu0 0
    %51 = vperm.xlu0 %50, %v45
    %v52 = vpop.permute.xlu0 %51
    %55 = vset.pattern.permute.xlu0 0
    %56 = vperm.xlu0 %55, %v46
    %v57 = vpop.permute.xlu0 %56
    %60 = vset.pattern.permute.xlu0 0
    %61 = vperm.xlu0 %60, %v47
    %v62 = vpop.permute.xlu0 %61
    %65 = vset.pattern.permute.xlu0 0
    %66 = vperm.xlu0 %65, %v48
    %v67 = vpop.permute.xlu0 %66
    %v73 = vunpack.c.l.b16 %v37
    %v74 = vunpack.c.l.b16 %v38
    %v75 = vunpack.c.l.b16 %v39
    %v76 = vunpack.c.l.b16 %v40
    %v77 = vpack.c.b16 %v74, %v73
    %v78 = vpack.c.b16 %v76, %v75
    %vm79 = vcmask 130048
    %v81 = vsel %vm79, %v77, 0
    %v84 = vsel %vm79, %v78, 0
    %v87 = vsel %vm79, %v29, 0
    %v90 = vsel %vm79, %v30, 0
    %v93 = vsel %vm79, %v31, 0
    %v96 = vsel %vm79, %v32, 0
    %v99 = vsel %vm79, %v33, 0
    %v102 = vsel %vm79, %v34, 0
    %v105 = vsel %vm79, %v35, 0
    %v108 = vsel %vm79, %v36, 0
    %110 = vmatprep.subr.bf16.mxu0 0
    %111 = vmatpush1.bf16.xpose.msra.mxu0 %v87
    %112 = vmatprep.subr.bf16.mxu0 0
    %113 = vmatpush1.bf16.xpose.msra.mxu0 %v90
    %114 = vmatprep.subr.bf16.mxu0 0
    %115 = vmatpush1.bf16.xpose.msra.mxu0 %v93
    %116 = vmatprep.subr.bf16.mxu0 0
    %117 = vmatpush1.bf16.xpose.msra.mxu0 %v96
    %118 = vmatprep.subr.bf16.mxu0 0
    %119 = vmatpush1.bf16.xpose.msra.mxu0 %v99
    %120 = vmatprep.subr.bf16.mxu0 0
    %121 = vmatpush1.bf16.xpose.msra.mxu0 %v102
    %122 = vmatprep.subr.bf16.mxu0 0
    %123 = vmatpush1.bf16.xpose.msra.mxu0 %v105
    %124 = vmatprep.subr.bf16.mxu0 0
    %125 = vmatpush1.bf16.xpose.msra.mxu0 %v108
    %126 = vmatprep.subr.bf16.mxu0 0
    %127 = vmatpush1.bf16.xpose.msra.mxu0 0
    %128 = vmatprep.subr.bf16.mxu0 0
    %129 = vmatpush1.bf16.xpose.msra.mxu0 0
    %130 = vmatprep.subr.bf16.mxu0 0
    %131 = vmatpush1.bf16.xpose.msra.mxu0 0
    %132 = vmatprep.subr.bf16.mxu0 0
    %133 = vmatpush1.bf16.xpose.msra.mxu0 0
    %134 = vmatprep.subr.bf16.mxu0 0
    %135 = vmatpush1.bf16.xpose.msra.mxu0 0
    %136 = vmatprep.subr.bf16.mxu0 0
    %137 = vmatpush1.bf16.xpose.msra.mxu0 0
    %138 = vmatprep.subr.bf16.mxu0 0
    %139 = vmatpush1.bf16.xpose.msra.mxu0 0
    %140 = vmatprep.subr.bf16.mxu0 0
    %141 = vmatpush1.bf16.xpose.msra.mxu0 0
    %142 = vmatprep.mubr.bf16.mxu0 0
    %143 = vmatmul.mubr.bf16.gmra.mrb[0].mxu0 %v81
    %v144 = vpop.f32.mrb[0].mxu0
    %v145 = vadd.f32 %v52, %v144
    %v146 = vpop.f32.mrb[0].mxu0
    %v147 = vpop.f32.mrb[0].mxu0
    %v148 = vadd.f32 %v57, %v147
    %v149 = vpop.f32.mrb[0].mxu0
    %150 = vmatprep.mubr.bf16.mxu0 0
    %151 = vmatmul.mubr.bf16.gmra.mrb[0].mxu0 %v84
    %v152 = vpop.f32.mrb[0].mxu0
    %v153 = vadd.f32 %v62, %v152
    %v154 = vpop.f32.mrb[0].mxu0
    %v155 = vpop.f32.mrb[0].mxu0
    %v156 = vadd.f32 %v67, %v155
    %v157 = vpop.f32.mrb[0].mxu0
    %158 = vdwg.mxu0
    %vm159 = vcmp.gt.f32.partialorder %v145, 0.0
    %vm160 = vcmp.gt.f32.partialorder %v148, 0.0
    %vm161 = vcmp.gt.f32.partialorder %v153, 0.0
    %vm162 = vcmp.gt.f32.partialorder %v156, 0.0
    %v163 = vmin.f32 %v145, 0.0
    %v164 = vmin.f32 %v148, 0.0
    %v165 = vmin.f32 %v153, 0.0
    %v166 = vmin.f32 %v156, 0.0
    %v167 = vmul.f32 %v163, 1.442695
    %v168 = vpow.pop %v167
    %v169 = vmul.f32 %v164, 1.442695
    %v170 = vpow.pop %v169
    %v171 = vmul.f32 %v165, 1.442695
    %v172 = vpow.pop %v171
    %v173 = vmul.f32 %v166, 1.442695
    %v174 = vpow.pop %v173
    %v175 = vsub.f32 %v168, 1.0
    %v176 = vsub.f32 %v170, 1.0
    %v177 = vsub.f32 %v172, 1.0
    %v178 = vsub.f32 %v174, 1.0
    %v179 = vsel %vm159, %v145, %v175
    %v180 = vsel %vm160, %v148, %v176
    %v181 = vsel %vm161, %v153, %v177
    %v182 = vsel %vm162, %v156, %v178
    %v183 = vld [vmem:[%s1 + $0x20] sm:$0xf]
    %v184 = vld [vmem:[%s1 + $0x24] sm:$0xf]
    %v185 = vld [vmem:[%s1 + $0x28] sm:$0xf]
    %v186 = vld [vmem:[%s1 + $0x2c] sm:$0xf]
    %v187 = vpack.c.bf16 %v180, %v179
    %v188 = vpack.c.bf16 %v182, %v181
    %v189 = vld [vmem:[%s1 + $0x30] sm:$0xf]
    %v190 = vld [vmem:[%s1 + $0x34] sm:$0xf]
    %v191 = vld [vmem:[%s1 + $0x38] sm:$0xf]
    %v192 = vld [vmem:[%s1 + $0x3c] sm:$0xf]
    %v193 = vunpack.c.l.bf16 %v189
    %v194 = vunpack.c.l.bf16 %v190
    %v195 = vunpack.c.l.bf16 %v191
    %v196 = vunpack.c.l.bf16 %v192
    %198 = vset.pattern.permute.xlu0 0
    %199 = vperm.xlu0 %198, %v193
    %v200 = vpop.permute.xlu0 %199
    %203 = vset.pattern.permute.xlu0 0
    %204 = vperm.xlu0 %203, %v194
    %v205 = vpop.permute.xlu0 %204
    %208 = vset.pattern.permute.xlu0 0
    %209 = vperm.xlu0 %208, %v195
    %v210 = vpop.permute.xlu0 %209
    %213 = vset.pattern.permute.xlu0 0
    %214 = vperm.xlu0 %213, %v196
    %v215 = vpop.permute.xlu0 %214
    %v221 = vunpack.c.l.b16 %v183
    %v222 = vunpack.c.l.b16 %v184
    %v223 = vunpack.c.l.b16 %v185
    %v224 = vunpack.c.l.b16 %v186
    %v225 = vpack.c.b16 %v222, %v221
    %v226 = vpack.c.b16 %v224, %v223
    %vm227 = vcmask 261120
    %v229 = vsel %vm227, %v225, 0
    %v232 = vsel %vm227, %v226, 0
    %234 = vmatprep.subr.bf16.mxu0 0
    %235 = vmatpush1.bf16.msra.mxu0 %v187
    %236 = vmatprep.subr.bf16.mxu0 0
    %237 = vmatpush1.bf16.msra.mxu0 %v188
    %238 = vmatprep.subr.bf16.mxu0 0
    %239 = vmatpush1.bf16.msra.mxu0 0
    %240 = vmatprep.subr.bf16.mxu0 0
    %241 = vmatpush1.bf16.msra.mxu0 0
    %242 = vmatprep.subr.bf16.mxu0 0
    %243 = vmatpush1.bf16.msra.mxu0 0
    %244 = vmatprep.subr.bf16.mxu0 0
    %245 = vmatpush1.bf16.msra.mxu0 0
    %246 = vmatprep.subr.bf16.mxu0 0
    %247 = vmatpush1.bf16.msra.mxu0 0
    %248 = vmatprep.subr.bf16.mxu0 0
    %249 = vmatpush1.bf16.msra.mxu0 0
    %250 = vmatprep.subr.bf16.mxu0 0
    %251 = vmatpush1.bf16.msra.mxu0 0
    %252 = vmatprep.subr.bf16.mxu0 0
    %253 = vmatpush1.bf16.msra.mxu0 0
    %254 = vmatprep.subr.bf16.mxu0 0
    %255 = vmatpush1.bf16.msra.mxu0 0
    %256 = vmatprep.subr.bf16.mxu0 0
    %257 = vmatpush1.bf16.msra.mxu0 0
    %258 = vmatprep.subr.bf16.mxu0 0
    %259 = vmatpush1.bf16.msra.mxu0 0
    %260 = vmatprep.subr.bf16.mxu0 0
    %261 = vmatpush1.bf16.msra.mxu0 0
    %262 = vmatprep.subr.bf16.mxu0 0
    %263 = vmatpush1.bf16.msra.mxu0 0
    %264 = vmatprep.subr.bf16.mxu0 0
    %265 = vmatpush1.bf16.msra.mxu0 0
    %266 = vmatprep.mubr.bf16.mxu0 0
    %267 = vmatmul.mubr.bf16.gmra.mrb[0].mxu0 %v229
    %v268 = vpop.f32.mrb[0].mxu0
    %v269 = vadd.f32 %v200, %v268
    %v270 = vpop.f32.mrb[0].mxu0
    %v271 = vpop.f32.mrb[0].mxu0
    %v272 = vadd.f32 %v205, %v271
    %v273 = vpop.f32.mrb[0].mxu0
    %274 = vmatprep.mubr.bf16.mxu0 0
    %275 = vmatmul.mubr.bf16.gmra.mrb[0].mxu0 %v232
    %v276 = vpop.f32.mrb[0].mxu0
    %v277 = vadd.f32 %v210, %v276
    %v278 = vpop.f32.mrb[0].mxu0
    %v279 = vpop.f32.mrb[0].mxu0
    %v280 = vadd.f32 %v215, %v279
    %v281 = vpop.f32.mrb[0].mxu0
    %282 = vdwg.mxu0
    %vm283 = vcmp.gt.f32.partialorder %v269, 0.0
    %vm284 = vcmp.gt.f32.partialorder %v272, 0.0
    %vm285 = vcmp.gt.f32.partialorder %v277, 0.0
    %vm286 = vcmp.gt.f32.partialorder %v280, 0.0
    %v287 = vmin.f32 %v269, 0.0
    %v288 = vmin.f32 %v272, 0.0
    %v289 = vmin.f32 %v277, 0.0
    %v290 = vmin.f32 %v280, 0.0
    %v291 = vmul.f32 %v287, 1.442695
    %v292 = vpow.pop %v291
    %v293 = vmul.f32 %v288, 1.442695
    %v294 = vpow.pop %v293
    %v295 = vmul.f32 %v289, 1.442695
    %v296 = vpow.pop %v295
    %v297 = vmul.f32 %v290, 1.442695
    %v298 = vpow.pop %v297
    %v299 = vsub.f32 %v292, 1.0
    %v300 = vsub.f32 %v294, 1.0
    %v301 = vsub.f32 %v296, 1.0
    %v302 = vsub.f32 %v298, 1.0
    %v303 = vsel %vm283, %v269, %v299
    %v304 = vsel %vm284, %v272, %v300
    %v305 = vsel %vm285, %v277, %v301
    %v306 = vsel %vm286, %v280, %v302
    %v307 = vld [vmem:[%s1 + $0x40] sm:$0xf]
    %v308 = vpack.c.bf16 %v304, %v303
    %v309 = vpack.c.bf16 %v306, %v305
    %v310 = vld [vmem:[%s1 + $0x48] sm:$0xf]
    %v311 = vunpack.c.l.bf16 %v310
    %313 = vset.pattern.permute.xlu0 0
    %314 = vperm.xlu0 %313, %v311
    %v315 = vpop.permute.xlu0 %314
    %v318 = vsel %vm227, %v307, 0
    %320 = vmatprep.subr.bf16.mxu0 0
    %321 = vmatpush1.bf16.msra.mxu0 %v308
    %322 = vmatprep.subr.bf16.mxu0 0
    %323 = vmatpush1.bf16.msra.mxu0 %v309
    %324 = vmatprep.subr.bf16.mxu0 0
    %325 = vmatpush1.bf16.msra.mxu0 0
    %326 = vmatprep.subr.bf16.mxu0 0
    %327 = vmatpush1.bf16.msra.mxu0 0
    %328 = vmatprep.subr.bf16.mxu0 0
    %329 = vmatpush1.bf16.msra.mxu0 0
    %330 = vmatprep.subr.bf16.mxu0 0
    %331 = vmatpush1.bf16.msra.mxu0 0
    %332 = vmatprep.subr.bf16.mxu0 0
    %333 = vmatpush1.bf16.msra.mxu0 0
    %334 = vmatprep.subr.bf16.mxu0 0
    %335 = vmatpush1.bf16.msra.mxu0 0
    %336 = vmatprep.subr.bf16.mxu0 0
    %337 = vmatpush1.bf16.msra.mxu0 0
    %338 = vmatprep.subr.bf16.mxu0 0
    %339 = vmatpush1.bf16.msra.mxu0 0
    %340 = vmatprep.subr.bf16.mxu0 0
    %341 = vmatpush1.bf16.msra.mxu0 0
    %342 = vmatprep.subr.bf16.mxu0 0
    %343 = vmatpush1.bf16.msra.mxu0 0
    %344 = vmatprep.subr.bf16.mxu0 0
    %345 = vmatpush1.bf16.msra.mxu0 0
    %346 = vmatprep.subr.bf16.mxu0 0
    %347 = vmatpush1.bf16.msra.mxu0 0
    %348 = vmatprep.subr.bf16.mxu0 0
    %349 = vmatpush1.bf16.msra.mxu0 0
    %350 = vmatprep.subr.bf16.mxu0 0
    %351 = vmatpush1.bf16.msra.mxu0 0
    %352 = vmatprep.mubr.bf16.mxu0 0
    %353 = vmatmul.mubr.bf16.gmra.mrb[0].mxu0 %v318
    %v354 = vpop.f32.mrb[0].mxu0
    %v355 = vadd.f32 %v315, %v354
    %v356 = vpop.f32.mrb[0].mxu0
    %v357 = vpop.f32.mrb[0].mxu0
    %v358 = vpop.f32.mrb[0].mxu0
    %359 = vdwg.mxu0
    %v360 = vlaneseq
    %v361 = vshrl.u32 %v360, 7
    %vm362 = vcmp.lt.s32.totalorder %v361, 6
    %v363 = vsel %vm362, %v355, -inf
    %v364 = vrot.slane %v363, 4
    %v365 = vmax.f32 %v363, %v364
    %v366 = vrot.slane %v365, 2
    %v367 = vmax.f32 %v365, %v366
    %v368 = vrot.slane %v367, 1
    %v369 = vmax.f32 %v367, %v368
    %v370 = vsub.f32 %v363, %v369
    %v371 = vmul.f32 %v370, 1.442695
    %v372 = vpow.pop %v371
    %v373 = vrot.slane %v372, 4
    %v374 = vadd.f32 %v372, %v373
    %v375 = vrot.slane %v374, 2
    %v376 = vadd.f32 %v374, %v375
    %v377 = vrot.slane %v376, 1
    %v378 = vadd.f32 %v376, %v377
    %v379 = vrcp.pop %v378
    %v380 = vmul.f32 %v372, %v379
    %v381 = vmul.f32 %v380, 1.442695
    %v382 = vpow.pop %v381
    %383 = vst [vmem:[#allocation2] sm:$0xff] %v382
    // Predicated region
    $region10: #{tpu_custom_call.1} parent=1 // pred_check
      _
    $region11: #{tpu_custom_call.1} parent=1 // pred_check_branch
      %385 = sbr.rel (0) target = $region13
    $region12: #{tpu_custom_call.1} parent=1 // pred_region
      %s387 = ssub.s32 128, 128
      %388 = vsyncadd [#allocation3], %s387
      %s390 = sshll.u32 [#allocation2], 4
      %s391 = int_to_ptr.vmem [resolvable:$true] %s390
      %393 = dma.vmem_to_hbm [thread:$0]  %s391, 128, %s2, [#allocation3]
    $region13: #{tpu_custom_call.1} parent=1 // pred_fallthru
      _
    // Predicated region
    $region14: #{tpu_custom_call.1} parent=1 // pred_check
      _
    $region15: #{tpu_custom_call.1} parent=1 // pred_check_branch
      %395 = sbr.rel (0) target = $region17
    $region16: #{tpu_custom_call.1} parent=1 // pred_region
      %396 = dma.done [#allocation3], 128
    $region17: #{tpu_custom_call.1} parent=1 // pred_fallthru
      _
    %397 = vsyncpa [#allocation3], 1

</llo_original>
